<compile_context>
chip_gen: v7x
topology: tpu7x:2x2x1
jax: 0.10.0
libtpu: 0.0.40
codegen_flags: <defaults>
</compile_context>

<pallas_src>
import numpy as np

import jax
import jax.numpy as jnp
from jax.experimental import pallas as pl
from jax.experimental.pallas import tpu as pltpu


def attn_pool_kernel(x_ref, w_ref, o_ref, m_sc, l_sc, acc_sc):
    # x_ref:  (TB, TS, D) VMEM block of activations
    # w_ref:  (1, D)      VMEM attention weight row
    # o_ref:  (TB, D)     VMEM pooled output block (resident across the S axis)
    # m_sc/l_sc: (TB,1,1) f32 running max / normalizer; acc_sc: (TB,1,D) f32.
    j = pl.program_id(1)

    @pl.when(j == 0)
    def _():
        m_sc[...] = jnp.full_like(m_sc, -jnp.inf)
        l_sc[...] = jnp.zeros_like(l_sc)
        acc_sc[...] = jnp.zeros_like(acc_sc)

    x = x_ref[...]                                        # (TB, TS, D)
    tb, _, d = x.shape

    # Attention scores on the MXU, lane-dense over the sequence axis:
    # (TB,1,D) @ (TB,TS,D)^T -> (TB,1,TS).  No (TB,TS,D) elementwise temp,
    # x is read from VMEM exactly twice (here and in the pool matmul below).
    # NOTE: the Linear bias is intentionally dropped — softmax over the
    # sequence axis is invariant to an additive constant.
    w_b = jnp.broadcast_to(w_ref[...][None], (tb, 1, d)).astype(x.dtype)
    s = jnp.einsum("bqd,bkd->bqk", w_b, x,
                   preferred_element_type=jnp.float32)    # (TB, 1, TS)

    # Online softmax update over sequence chunks (degenerates to a plain
    # softmax when the S axis is a single grid step).
    m_new = jnp.maximum(m_sc[...], jnp.max(s, axis=-1, keepdims=True))
    alpha = jnp.exp(m_sc[...] - m_new)                    # (TB, 1, 1)
    e = jnp.exp(s - m_new)                                # (TB, 1, TS)
    l_sc[...] = alpha * l_sc[...] + jnp.sum(e, axis=-1, keepdims=True)
    # Weighted pool on the MXU: (TB,1,TS) @ (TB,TS,D) -> (TB,1,D).
    acc_sc[...] = alpha * acc_sc[...] + jnp.einsum(
        "bqk,bkd->bqd", e.astype(x.dtype), x,
        preferred_element_type=jnp.float32)
    m_sc[...] = m_new

    @pl.when(j == pl.num_programs(1) - 1)
    def _():
        # Exact division — the kernel is memory-bound so precision is free.
        pooled = acc_sc[...] / l_sc[...]                  # (TB, 1, D)
        o_ref[...] = pooled[:, 0, :].astype(o_ref.dtype)


def _vmem_capacity_bytes():
    try:
        info = pltpu.get_tpu_info()
        return int(getattr(info, "vmem_capacity_bytes", 128 << 20))
    except Exception:
        return 128 << 20   # v5e/v6e physical VMEM


def _round_up(x, m):
    return ((x + m - 1) // m) * m


def _plan_blocks(B, S, D, x_itemsize, out_itemsize, budget):
    """Pick (tb, ts): batch rows / sequence positions per grid step."""

    def usage(tb, ts):
        # Count the real per-step VMEM footprint, not just the x block:
        return (2 * tb * ts * D * x_itemsize        # double-buffered x block
                + 2 * tb * D * out_itemsize         # double-buffered out block
                + 3 * tb * ts * 4                   # scores / exp intermediates
                + 3 * tb * D * 4)                   # f32 accumulator + pooled

    # Batch-tile candidates: sublane-aligned (multiples of 8, never > B);
    # tiny batches just use B (block == full dim is always legal).
    if B <= 8:
        tb_cands = [B]
    else:
        max_tb = max(8, (B // 8) * 8)
        tb_cands = list(range(8, max_tb + 1, 8))

    # Preferred: single pass over S (ts = S).  Prefer >=4 grid steps so the
    # BlockSpec double buffer has work to overlap, then the largest tile.
    fits = [t for t in tb_cands if usage(t, S) <= budget]
    if fits:
        pipelined = [t for t in fits if pl.cdiv(B, t) >= 4]
        return (max(pipelined) if pipelined else max(fits)), S

    # Long sequences: flash-style tiling over S.  ts must divide S and be a
    # multiple of 8 (or equal S) to satisfy the (8,128) block constraint and
    # avoid cross-row contamination from a ragged sequence tail.
    tb = B if B <= 8 else 8
    ts_cands = [t for t in range(8, S + 1, 8)
                if S % t == 0 and usage(tb, t) <= budget]
    if ts_cands:
        return tb, max(ts_cands)
    # TODO(synk): add in-kernel masking so awkward (non multiple-of-8) S can
    # still be sequence-tiled; fall back to the best expressible block.
    return tb, (8 if S % 8 == 0 else S)


def attention_pooling(x, w, b=None):
    """AttentionPooling forward.  x: (B, S, D), w: (1, D) Linear weight.

    `b` (the Linear bias, shape (1,)) is accepted for API parity with
    nn.Linear but unused: softmax over dim=1 is invariant to it.
    """
    del b
    B, S, D = x.shape
    x_itemsize = jnp.dtype(x.dtype).itemsize
    out_dtype = x.dtype
    out_itemsize = jnp.dtype(out_dtype).itemsize

    vmem_cap = _vmem_capacity_bytes()
    # 48 MiB on v7x (64 MiB physical), 96 MiB on v5e/v6e (128 MiB physical).
    vmem_limit = min(vmem_cap * 3 // 4, 96 << 20)
    # ~10-12 MiB block budget on v7x, ~21 MiB on v5e/v6e.
    block_budget = vmem_cap // 6

    tb, ts = _plan_blocks(B, S, D, x_itemsize, out_itemsize, block_budget)
    grid = (pl.cdiv(B, tb), pl.cdiv(S, ts))

    cost = pl.CostEstimate(
        flops=4 * B * S * D + 6 * B * S,              # two matmuls + softmax
        transcendentals=B * S + B * grid[1],          # exp(s) + exp(alpha)
        bytes_accessed=B * S * D * x_itemsize + B * D * out_itemsize + D * 4,
    )

    return pl.pallas_call(
        attn_pool_kernel,
        out_shape=jax.ShapeDtypeStruct((B, D), out_dtype),
        grid_spec=pltpu.PrefetchScalarGridSpec(
            num_scalar_prefetch=0,
            grid=grid,
            in_specs=[
                pl.BlockSpec((tb, ts, D), lambda i, j: (i, j, 0)),
                pl.BlockSpec((1, D), lambda i, j: (0, 0)),
            ],
            out_specs=pl.BlockSpec((tb, D), lambda i, j: (i, 0)),
            scratch_shapes=[
                pltpu.VMEM((tb, 1, 1), jnp.float32),   # running max
                pltpu.VMEM((tb, 1, 1), jnp.float32),   # running normalizer
                pltpu.VMEM((tb, 1, D), jnp.float32),   # weighted-sum accumulator
            ],
        ),
        compiler_params=pltpu.CompilerParams(
            dimension_semantics=("parallel", "arbitrary"),
            vmem_limit_bytes=vmem_limit,
        ),
        cost_estimate=cost,
    )(x, w)


if __name__ == "__main__":
    B, S, D = 2, 8, 32  # batch, sequence, embed_dim

    key = jax.random.PRNGKey(0)
    kx, kw, kb = jax.random.split(key, 3)

    x = jax.random.normal(kx, (B, S, D), dtype=jnp.float32)
    # nn.Linear(embed_dim, 1): weight (1, D), bias (1,) — deterministic init.
    bound = 1.0 / (D ** 0.5)
    w = jax.random.uniform(kw, (1, D), dtype=jnp.float32, minval=-bound, maxval=bound)
    b = jax.random.uniform(kb, (1,), dtype=jnp.float32, minval=-bound, maxval=bound)

    out = jax.block_until_ready(attention_pooling(x, w, b))

    # float64 numpy reference of the exact PyTorch forward (bias included —
    # it is a softmax no-op, so the bias-free kernel must still match).
    xn = np.asarray(x, dtype=np.float64)
    wn = np.asarray(w, dtype=np.float64)
    bn = np.asarray(b, dtype=np.float64)
    scores = xn @ wn.T + bn                              # (B, S, 1)
    scores = scores - scores.max(axis=1, keepdims=True)
    attn = np.exp(scores)
    attn = attn / attn.sum(axis=1, keepdims=True)
    ref = (xn * attn).sum(axis=1)                        # (B, D)

    assert out.shape == (B, D)
    err = float(np.max(np.abs(np.asarray(out, dtype=np.float64) - ref)))
    # Exact reciprocal now; tolerance only covers MXU matmul rounding.
    assert err < 1e-3, err

    print("KERNEL_OK")
</pallas_src>

<mosaic_0001>
module attributes {stable_mosaic.version = 11 : i64} {
  func.func @attn_pool_kernel(%arg0: i32, %arg1: i32, %arg2: memref<2x8x32xf32, #tpu.memory_space<vmem>>, %arg3: memref<1x32xf32, #tpu.memory_space<vmem>>, %arg4: memref<2x32xf32, #tpu.memory_space<vmem>>, %arg5: memref<2x1x1xf32, #tpu.memory_space<vmem>>, %arg6: memref<2x1x1xf32, #tpu.memory_space<vmem>>, %arg7: memref<2x1x32xf32, #tpu.memory_space<vmem>>) attributes {dimension_semantics = [#tpu.dimension_semantics<parallel>, #tpu.dimension_semantics<arbitrary>], iteration_bounds = array<i64: 1, 1>, scalar_prefetch = 0 : i64, scratch_operands = 3 : i64, tpu.core_type = #tpu.core_type<tc>, window_params = [{transform_indices = @transform_0, window_bounds = array<i64: 2, 8, 32>}, {pipeline_mode = #tpu.pipeline_mode<synchronous>, transform_indices = @transform_1, window_bounds = array<i64: 1, 32>}, {transform_indices = @transform_2, window_bounds = array<i64: 2, 32>}]} {
    %c0_i32 = arith.constant 0 : i32
    %0 = arith.cmpi eq, %arg1, %c0_i32 : i32
    %1 = arith.extui %0 : i1 to i32
    %c0_i32_0 = arith.constant 0 : i32
    %2 = arith.cmpi ne, %1, %c0_i32_0 : i32
    scf.if %2 {
      %cst_31 = arith.constant 0xFF800000 : f32
      %35 = vector.broadcast %cst_31 : f32 to vector<2x1x1xf32>
      %c0_32 = arith.constant 0 : index
      %c0_33 = arith.constant 0 : index
      %c0_34 = arith.constant 0 : index
      %36 = vector.load %arg5[%c0_32, %c0_33, %c0_34] : memref<2x1x1xf32, #tpu.memory_space<vmem>>, vector<2x1x1xf32>
      tpu.vector_store %arg5[%c0_32, %c0_33, %c0_34], %35 {strides = array<i32>} : memref<2x1x1xf32, #tpu.memory_space<vmem>>, vector<2x1x1xf32>,
      %cst_35 = arith.constant 0.000000e+00 : f32
      %37 = vector.broadcast %cst_35 : f32 to vector<2x1x1xf32>
      %c0_36 = arith.constant 0 : index
      %c0_37 = arith.constant 0 : index
      %c0_38 = arith.constant 0 : index
      %38 = vector.load %arg6[%c0_36, %c0_37, %c0_38] : memref<2x1x1xf32, #tpu.memory_space<vmem>>, vector<2x1x1xf32>
      tpu.vector_store %arg6[%c0_36, %c0_37, %c0_38], %37 {strides = array<i32>} : memref<2x1x1xf32, #tpu.memory_space<vmem>>, vector<2x1x1xf32>,
      %cst_39 = arith.constant 0.000000e+00 : f32
      %39 = vector.broadcast %cst_39 : f32 to vector<2x1x32xf32>
      %c0_40 = arith.constant 0 : index
      %c0_41 = arith.constant 0 : index
      %c0_42 = arith.constant 0 : index
      %40 = vector.load %arg7[%c0_40, %c0_41, %c0_42] : memref<2x1x32xf32, #tpu.memory_space<vmem>>, vector<2x1x32xf32>
      tpu.vector_store %arg7[%c0_40, %c0_41, %c0_42], %39 {strides = array<i32>} : memref<2x1x32xf32, #tpu.memory_space<vmem>>, vector<2x1x32xf32>,
    } else {
    }
    %c0 = arith.constant 0 : index
    %c0_1 = arith.constant 0 : index
    %c0_2 = arith.constant 0 : index
    %3 = vector.load %arg2[%c0, %c0_1, %c0_2] : memref<2x8x32xf32, #tpu.memory_space<vmem>>, vector<2x8x32xf32>
    %c0_3 = arith.constant 0 : index
    %c0_4 = arith.constant 0 : index
    %4 = vector.load %arg3[%c0_3, %c0_4] : memref<1x32xf32, #tpu.memory_space<vmem>>, vector<1x32xf32>
    %5 = vector.shape_cast %4 : vector<1x32xf32> to vector<1x1x32xf32>
    %6 = vector.shape_cast %5 : vector<1x1x32xf32> to vector<1x1x32xf32>
    %7 = vector.broadcast %6 : vector<1x1x32xf32> to vector<2x1x32xf32>
    "tpu.trace_start"() <{level = 10 : i32, message = "bqd,bkd->bqk"}> : () -> ()
    %cst = arith.constant dense<0.000000e+00> : vector<2x1x8xf32>
    %8 = tpu.matmul %7, %3, %cst {dimension_numbers = #tpu.dot_dimension_numbers<[2], [2], [1], [1], [0, 0, 0, 1, 1, 1], [0], [0]>} : vector<2x1x32xf32>, vector<2x8x32xf32>, vector<2x1x8xf32> -> vector<2x1x8xf32>
    "tpu.trace_stop"() : () -> ()
    %c0_5 = arith.constant 0 : index
    %c0_6 = arith.constant 0 : index
    %c0_7 = arith.constant 0 : index
    %9 = vector.load %arg5[%c0_5, %c0_6, %c0_7] : memref<2x1x1xf32, #tpu.memory_space<vmem>>, vector<2x1x1xf32>
    %cst_8 = arith.constant dense<0xFF800000> : vector<2x1xf32>
    %10 = vector.multi_reduction <maximumf>, %8, %cst_8 [2] : vector<2x1x8xf32> to vector<2x1xf32>
    %11 = vector.shape_cast %10 : vector<2x1xf32> to vector<2x1x1xf32>
    %12 = arith.maximumf %9, %11 : vector<2x1x1xf32>
    %c0_9 = arith.constant 0 : index
    %c0_10 = arith.constant 0 : index
    %c0_11 = arith.constant 0 : index
    %13 = vector.load %arg5[%c0_9, %c0_10, %c0_11] : memref<2x1x1xf32, #tpu.memory_space<vmem>>, vector<2x1x1xf32>
    %14 = arith.subf %13, %12 : vector<2x1x1xf32>
    %15 = math.exp %14 : vector<2x1x1xf32>
    %16 = vector.broadcast %12 : vector<2x1x1xf32> to vector<2x1x8xf32>
    %17 = arith.subf %8, %16 : vector<2x1x8xf32>
    %18 = math.exp %17 : vector<2x1x8xf32>
    %c0_12 = arith.constant 0 : index
    %c0_13 = arith.constant 0 : index
    %c0_14 = arith.constant 0 : index
    %19 = vector.load %arg6[%c0_12, %c0_13, %c0_14] : memref<2x1x1xf32, #tpu.memory_space<vmem>>, vector<2x1x1xf32>
    %20 = arith.mulf %15, %19 : vector<2x1x1xf32>
    %cst_15 = arith.constant dense<0.000000e+00> : vector<2x1xf32>
    %21 = vector.multi_reduction <add>, %18, %cst_15 [2] : vector<2x1x8xf32> to vector<2x1xf32>
    %22 = vector.shape_cast %21 : vector<2x1xf32> to vector<2x1x1xf32>
    %23 = arith.addf %20, %22 : vector<2x1x1xf32>
    %c0_16 = arith.constant 0 : index
    %c0_17 = arith.constant 0 : index
    %c0_18 = arith.constant 0 : index
    %24 = vector.load %arg6[%c0_16, %c0_17, %c0_18] : memref<2x1x1xf32, #tpu.memory_space<vmem>>, vector<2x1x1xf32>
    tpu.vector_store %arg6[%c0_16, %c0_17, %c0_18], %23 {strides = array<i32>} : memref<2x1x1xf32, #tpu.memory_space<vmem>>, vector<2x1x1xf32>,
    %c0_19 = arith.constant 0 : index
    %c0_20 = arith.constant 0 : index
    %c0_21 = arith.constant 0 : index
    %25 = vector.load %arg7[%c0_19, %c0_20, %c0_21] : memref<2x1x32xf32, #tpu.memory_space<vmem>>, vector<2x1x32xf32>
    %26 = vector.broadcast %15 : vector<2x1x1xf32> to vector<2x1x32xf32>
    %27 = arith.mulf %26, %25 : vector<2x1x32xf32>
    "tpu.trace_start"() <{level = 10 : i32, message = "bqk,bkd->bqd"}> : () -> ()
    %cst_22 = arith.constant dense<0.000000e+00> : vector<2x1x32xf32>
    %28 = tpu.matmul %18, %3, %cst_22 {dimension_numbers = #tpu.dot_dimension_numbers<[2], [1], [1], [2], [0, 0, 0, 1, 1, 2], [0], [0]>} : vector<2x1x8xf32>, vector<2x8x32xf32>, vector<2x1x32xf32> -> vector<2x1x32xf32>
    "tpu.trace_stop"() : () -> ()
    %29 = arith.addf %27, %28 : vector<2x1x32xf32>
    %c0_23 = arith.constant 0 : index
    %c0_24 = arith.constant 0 : index
    %c0_25 = arith.constant 0 : index
    %30 = vector.load %arg7[%c0_23, %c0_24, %c0_25] : memref<2x1x32xf32, #tpu.memory_space<vmem>>, vector<2x1x32xf32>
    tpu.vector_store %arg7[%c0_23, %c0_24, %c0_25], %29 {strides = array<i32>} : memref<2x1x32xf32, #tpu.memory_space<vmem>>, vector<2x1x32xf32>,
    %c0_26 = arith.constant 0 : index
    %c0_27 = arith.constant 0 : index
    %c0_28 = arith.constant 0 : index
    %31 = vector.load %arg5[%c0_26, %c0_27, %c0_28] : memref<2x1x1xf32, #tpu.memory_space<vmem>>, vector<2x1x1xf32>
    tpu.vector_store %arg5[%c0_26, %c0_27, %c0_28], %12 {strides = array<i32>} : memref<2x1x1xf32, #tpu.memory_space<vmem>>, vector<2x1x1xf32>,
    %c0_i32_29 = arith.constant 0 : i32
    %32 = arith.cmpi eq, %arg1, %c0_i32_29 : i32
    %33 = arith.extui %32 : i1 to i32
    %c0_i32_30 = arith.constant 0 : i32
    %34 = arith.cmpi ne, %33, %c0_i32_30 : i32
    scf.if %34 {
      %c0_31 = arith.constant 0 : index
      %c0_32 = arith.constant 0 : index
      %c0_33 = arith.constant 0 : index
      %35 = vector.load %arg7[%c0_31, %c0_32, %c0_33] : memref<2x1x32xf32, #tpu.memory_space<vmem>>, vector<2x1x32xf32>
      %c0_34 = arith.constant 0 : index
      %c0_35 = arith.constant 0 : index
      %c0_36 = arith.constant 0 : index
      %36 = vector.load %arg6[%c0_34, %c0_35, %c0_36] : memref<2x1x1xf32, #tpu.memory_space<vmem>>, vector<2x1x1xf32>
      %37 = vector.broadcast %36 : vector<2x1x1xf32> to vector<2x1x32xf32>
      %38 = arith.divf %35, %37 : vector<2x1x32xf32>
      %39 = vector.shape_cast %38 : vector<2x1x32xf32> to vector<2x32xf32>
      %c0_37 = arith.constant 0 : index
      %c0_38 = arith.constant 0 : index
      %40 = vector.load %arg4[%c0_37, %c0_38] : memref<2x32xf32, #tpu.memory_space<vmem>>, vector<2x32xf32>
      tpu.vector_store %arg4[%c0_37, %c0_38], %39 {strides = array<i32>} : memref<2x32xf32, #tpu.memory_space<vmem>>, vector<2x32xf32>,
    } else {
    }
    return
  }
  func.func @transform_0(%arg0: i32, %arg1: i32) -> (i32, i32, i32) {
    %c0_i32 = arith.constant 0 : i32
    %c0_i32_0 = arith.constant 0 : i32
    return %arg0, %arg1, %c0_i32 : i32, i32, i32
  }
  func.func @transform_1(%arg0: i32, %arg1: i32) -> (i32, i32) {
    %c0_i32 = arith.constant 0 : i32
    %c0_i32_0 = arith.constant 0 : i32
    %c0_i32_1 = arith.constant 0 : i32
    return %c0_i32, %c0_i32_0 : i32, i32
  }
  func.func @transform_2(%arg0: i32, %arg1: i32) -> (i32, i32) {
    %c0_i32 = arith.constant 0 : i32
    %c0_i32_0 = arith.constant 0 : i32
    return %arg0, %c0_i32 : i32, i32
  }
}

</mosaic_0001>

<llo_original>
// kernel: tpu_custom_call.1
$region0: #{tpu_custom_call.1}
  #allocation0 [shape = 'u32[]', space=smem, size = 0x4, offset = 0x4, fixed_abs, tag = 'smem constant byte address 0x4 - core index']
  #allocation1 [shape = 'u32[144,128]{1,0:T(1,128)}', space=vmem, size = 0x12000, scoped, tag = 'internal scratch']
  #allocation2 [shape = 'f32[2,1,1]{2,1,0:T(1,128)}', space=vmem, size = 0x400, scoped, tag = 'scratch operand']
  #allocation3 [shape = 'f32[2,1,1]{2,1,0:T(1,128)}', space=vmem, size = 0x400, scoped, tag = 'scratch operand']
  #allocation4 [shape = 'f32[2,1,32]{2,1,0:T(1,128)}', space=vmem, size = 0x400, scoped, tag = 'scratch operand']
  %s0 = inlined_call_operand.hbm [shape: f32[2,8,32], index: 0, kind: input, shape index: {}]
  %s1 = inlined_call_operand.hbm [shape: f32[1,32], index: 1, kind: input, shape index: {}]
  %s2 = inlined_call_operand.hbm [shape: f32[2,32], index: 2, kind: output, shape index: {}]
  %s3 = sld [smem:[#allocation0]]
  $region34: #{tpu_custom_call.1} parent=0
    _
  %s5 = ssub.s32 1, %s3
  %s6 = scalar_select 0, %s5, %s3
  $region1: #{tpu_custom_call.1} parent=0
    #allocation5 [shape = 'u8[8192]{0}', space=vmem, size = 0x2000, scoped, tag = 'input window, operand 0, single buffered']
    #allocation6 [shape = 's32[1]{0}', space=sflag, size = 0x4, scoped, tag = 'scoped memory for tpu_custom_call.1']
    #allocation7 [shape = 's32[1]{0}', space=sflag, size = 0x4, scoped, tag = 'scoped memory for tpu_custom_call.1']
    #allocation8 [shape = 'u8[512]{0}', space=vmem, size = 0x400, scoped, tag = 'input window, operand 1, single buffered']
    #allocation9 [shape = 's32[1]{0}', space=sflag, size = 0x4, scoped, tag = 'scoped memory for tpu_custom_call.1']
    #allocation10 [shape = 'u8[1024]{0}', space=vmem, size = 0x400, scoped, tag = 'output window, operand 0, single buffered']
    %7 = vsyncpa [#allocation6], 0
    %8 = vsyncpa [#allocation9], 0
    %9 = vsyncpa [#allocation7], 0
    // Predicated region
    $region2: #{tpu_custom_call.1} parent=1 // pred_check
      _
    $region3: #{tpu_custom_call.1} parent=1 // pred_check_branch
      %11 = sbr.rel (0) target = $region5
    $region4: #{tpu_custom_call.1} parent=1 // pred_region
      %s13 = ssub.s32 256, 256
      %14 = vsyncadd [#allocation6], %s13
      %s15 = sshll.u32 [#allocation5], 4
      %s16 = int_to_ptr.vmem [resolvable:$true] %s15
      %21 = dma.hbm_to_vmem [thread:$0]  %s0, 256, %s16, [#allocation6], 128, 128, 8
    $region5: #{tpu_custom_call.1} parent=1 // pred_fallthru
      _
    // Predicated region
    $region6: #{tpu_custom_call.1} parent=1 // pred_check
      _
    $region7: #{tpu_custom_call.1} parent=1 // pred_check_branch
      %23 = sbr.rel (0) target = $region9
    $region8: #{tpu_custom_call.1} parent=1 // pred_region
      %s25 = ssub.s32 16, 16
      %26 = vsyncadd [#allocation9], %s25
      %s28 = sshll.u32 [#allocation8], 4
      %s29 = int_to_ptr.vmem [resolvable:$true] %s28
      %31 = dma.hbm_to_vmem [thread:$0]  %s1, 16, %s29, [#allocation9]
    $region9: #{tpu_custom_call.1} parent=1 // pred_fallthru
      _
    // Predicated region
    $region10: #{tpu_custom_call.1} parent=1 // pred_check
      _
    $region11: #{tpu_custom_call.1} parent=1 // pred_check_branch
      %33 = sbr.rel (0) target = $region13
    $region12: #{tpu_custom_call.1} parent=1 // pred_region
      %34 = dma.done [#allocation6], 256
    $region13: #{tpu_custom_call.1} parent=1 // pred_fallthru
      _
    // Predicated region
    $region14: #{tpu_custom_call.1} parent=1 // pred_check
      _
    $region15: #{tpu_custom_call.1} parent=1 // pred_check_branch
      %36 = sbr.rel (0) target = $region17
    $region16: #{tpu_custom_call.1} parent=1 // pred_region
      %37 = dma.done [#allocation9], 16
    $region17: #{tpu_custom_call.1} parent=1 // pred_fallthru
      _
    %p38 = scmp.eq.s32.totalorder 0, 0
    // Predicated region
    $region18: #{tpu_custom_call.1} parent=1 // pred_check
      %p39 = pneg %p38
    $region19: #{tpu_custom_call.1} parent=1 // pred_check_branch
      %41 = sbr.rel (%p39) target = $region21
    $region20: #{tpu_custom_call.1} parent=1 // pred_region
      %vm42 = vcmask 0
      %43 = vst.msk [vmem:[#allocation2] sm:$0x1] %vm42, -inf
      %44 = vst.msk [vmem:[#allocation2 + $0x1] sm:$0x1] %vm42, -inf
      %45 = vst.msk [vmem:[#allocation3] sm:$0x1] %vm42, 0.0
      %46 = vst.msk [vmem:[#allocation3 + $0x1] sm:$0x1] %vm42, 0.0
      %vm47 = vcmask 253952
      %48 = vst.msk [vmem:[#allocation4] sm:$0x1] %vm47, 0.0
      %49 = vst.msk [vmem:[#allocation4 + $0x1] sm:$0x1] %vm47, 0.0
    $region21: #{tpu_custom_call.1} parent=1 // pred_fallthru
      _
    %v50 = vld [vmem:[#allocation5] sm:$0xff]
    %v51 = vld [vmem:[#allocation5 + $0x8] sm:$0xff]
    %v52 = vld [vmem:[#allocation8] sm:$0x1]
    %vm53 = vcmask 261120
    %v55 = vsel %vm53, %v52, 0
    %v58 = vsel %vm53, %v50, 0
    %60 = vmatprep.subr.mxu0 0.0
    %61 = vmatpush1.xpose.msra.mxu0 %v58
    %62 = vmatprep.subr.mxu0 0.0
    %63 = vmatpush1.xpose.msra.mxu0 0.0
    %64 = vmatprep.subr.mxu0 0.0
    %65 = vmatpush1.xpose.msra.mxu0 0.0
    %66 = vmatprep.subr.mxu0 0.0
    %67 = vmatpush1.xpose.msra.mxu0 0.0
    %68 = vmatprep.subr.mxu0 0.0
    %69 = vmatpush1.xpose.msra.mxu0 0.0
    %70 = vmatprep.subr.mxu0 0.0
    %71 = vmatpush1.xpose.msra.mxu0 0.0
    %72 = vmatprep.subr.mxu0 0.0
    %73 = vmatpush1.xpose.msra.mxu0 0.0
    %74 = vmatprep.subr.mxu0 0.0
    %75 = vmatpush1.xpose.msra.mxu0 0.0
    %76 = vmatprep.subr.mxu0 0.0
    %77 = vmatpush1.xpose.msra.mxu0 0.0
    %78 = vmatprep.subr.mxu0 0.0
    %79 = vmatpush1.xpose.msra.mxu0 0.0
    %80 = vmatprep.subr.mxu0 0.0
    %81 = vmatpush1.xpose.msra.mxu0 0.0
    %82 = vmatprep.subr.mxu0 0.0
    %83 = vmatpush1.xpose.msra.mxu0 0.0
    %84 = vmatprep.subr.mxu0 0.0
    %85 = vmatpush1.xpose.msra.mxu0 0.0
    %86 = vmatprep.subr.mxu0 0.0
    %87 = vmatpush1.xpose.msra.mxu0 0.0
    %88 = vmatprep.subr.mxu0 0.0
    %89 = vmatpush1.xpose.msra.mxu0 0.0
    %90 = vmatprep.subr.mxu0 0.0
    %91 = vmatpush1.xpose.msra.mxu0 0.0
    %92 = vmatprep.subr.mxu0 0.0
    %93 = vmatpush1.xpose.msra.mxu0 0.0
    %94 = vmatprep.subr.mxu0 0.0
    %95 = vmatpush1.xpose.msra.mxu0 0.0
    %96 = vmatprep.subr.mxu0 0.0
    %97 = vmatpush1.xpose.msra.mxu0 0.0
    %98 = vmatprep.subr.mxu0 0.0
    %99 = vmatpush1.xpose.msra.mxu0 0.0
    %100 = vmatprep.subr.mxu0 0.0
    %101 = vmatpush1.xpose.msra.mxu0 0.0
    %102 = vmatprep.subr.mxu0 0.0
    %103 = vmatpush1.xpose.msra.mxu0 0.0
    %104 = vmatprep.subr.mxu0 0.0
    %105 = vmatpush1.xpose.msra.mxu0 0.0
    %106 = vmatprep.subr.mxu0 0.0
    %107 = vmatpush1.xpose.msra.mxu0 0.0
    %108 = vmatprep.subr.mxu0 0.0
    %109 = vmatpush1.xpose.msra.mxu0 0.0
    %110 = vmatprep.subr.mxu0 0.0
    %111 = vmatpush1.xpose.msra.mxu0 0.0
    %112 = vmatprep.subr.mxu0 0.0
    %113 = vmatpush1.xpose.msra.mxu0 0.0
    %114 = vmatprep.subr.mxu0 0.0
    %115 = vmatpush1.xpose.msra.mxu0 0.0
    %116 = vmatprep.subr.mxu0 0.0
    %117 = vmatpush1.xpose.msra.mxu0 0.0
    %118 = vmatprep.subr.mxu0 0.0
    %119 = vmatpush1.xpose.msra.mxu0 0.0
    %120 = vmatprep.subr.mxu0 0.0
    %121 = vmatpush1.xpose.msra.mxu0 0.0
    %122 = vmatprep.subr.mxu0 0.0
    %123 = vmatpush1.xpose.msra.mxu0 0.0
    %124 = vmatprep.mubr.f32.mxu0 0.0
    %125 = vmatmul.mubr.f32.gmra.mrb[0].mxu0 %v55
    %v126 = vpop.f32.mrb[0].mxu0
    %v127 = vadd.f32 0.0, %v126
    %v128 = vpop.f32.mrb[0].mxu0
    %129 = vdwg.mxu0
    %v131 = vsel %vm53, %v51, 0
    %133 = vmatprep.subr.mxu0 0.0
    %134 = vmatpush1.xpose.msra.mxu0 %v131
    %135 = vmatprep.subr.mxu0 0.0
    %136 = vmatpush1.xpose.msra.mxu0 0.0
    %137 = vmatprep.subr.mxu0 0.0
    %138 = vmatpush1.xpose.msra.mxu0 0.0
    %139 = vmatprep.subr.mxu0 0.0
    %140 = vmatpush1.xpose.msra.mxu0 0.0
    %141 = vmatprep.subr.mxu0 0.0
    %142 = vmatpush1.xpose.msra.mxu0 0.0
    %143 = vmatprep.subr.mxu0 0.0
    %144 = vmatpush1.xpose.msra.mxu0 0.0
    %145 = vmatprep.subr.mxu0 0.0
    %146 = vmatpush1.xpose.msra.mxu0 0.0
    %147 = vmatprep.subr.mxu0 0.0
    %148 = vmatpush1.xpose.msra.mxu0 0.0
    %149 = vmatprep.subr.mxu0 0.0
    %150 = vmatpush1.xpose.msra.mxu0 0.0
    %151 = vmatprep.subr.mxu0 0.0
    %152 = vmatpush1.xpose.msra.mxu0 0.0
    %153 = vmatprep.subr.mxu0 0.0
    %154 = vmatpush1.xpose.msra.mxu0 0.0
    %155 = vmatprep.subr.mxu0 0.0
    %156 = vmatpush1.xpose.msra.mxu0 0.0
    %157 = vmatprep.subr.mxu0 0.0
    %158 = vmatpush1.xpose.msra.mxu0 0.0
    %159 = vmatprep.subr.mxu0 0.0
    %160 = vmatpush1.xpose.msra.mxu0 0.0
    %161 = vmatprep.subr.mxu0 0.0
    %162 = vmatpush1.xpose.msra.mxu0 0.0
    %163 = vmatprep.subr.mxu0 0.0
    %164 = vmatpush1.xpose.msra.mxu0 0.0
    %165 = vmatprep.subr.mxu0 0.0
    %166 = vmatpush1.xpose.msra.mxu0 0.0
    %167 = vmatprep.subr.mxu0 0.0
    %168 = vmatpush1.xpose.msra.mxu0 0.0
    %169 = vmatprep.subr.mxu0 0.0
    %170 = vmatpush1.xpose.msra.mxu0 0.0
    %171 = vmatprep.subr.mxu0 0.0
    %172 = vmatpush1.xpose.msra.mxu0 0.0
    %173 = vmatprep.subr.mxu0 0.0
    %174 = vmatpush1.xpose.msra.mxu0 0.0
    %175 = vmatprep.subr.mxu0 0.0
    %176 = vmatpush1.xpose.msra.mxu0 0.0
    %177 = vmatprep.subr.mxu0 0.0
    %178 = vmatpush1.xpose.msra.mxu0 0.0
    %179 = vmatprep.subr.mxu0 0.0
    %180 = vmatpush1.xpose.msra.mxu0 0.0
    %181 = vmatprep.subr.mxu0 0.0
    %182 = vmatpush1.xpose.msra.mxu0 0.0
    %183 = vmatprep.subr.mxu0 0.0
    %184 = vmatpush1.xpose.msra.mxu0 0.0
    %185 = vmatprep.subr.mxu0 0.0
    %186 = vmatpush1.xpose.msra.mxu0 0.0
    %187 = vmatprep.subr.mxu0 0.0
    %188 = vmatpush1.xpose.msra.mxu0 0.0
    %189 = vmatprep.subr.mxu0 0.0
    %190 = vmatpush1.xpose.msra.mxu0 0.0
    %191 = vmatprep.subr.mxu0 0.0
    %192 = vmatpush1.xpose.msra.mxu0 0.0
    %193 = vmatprep.subr.mxu0 0.0
    %194 = vmatpush1.xpose.msra.mxu0 0.0
    %195 = vmatprep.subr.mxu0 0.0
    %196 = vmatpush1.xpose.msra.mxu0 0.0
    %197 = vmatprep.mubr.f32.mxu0 0.0
    %198 = vmatmul.mubr.f32.gmra.mrb[0].mxu0 %v55
    %v199 = vpop.f32.mrb[0].mxu0
    %v200 = vadd.f32 0.0, %v199
    %v201 = vpop.f32.mrb[0].mxu0
    %202 = vdwg.mxu0
    %v203 = vld [vmem:[#allocation2] sm:$0x1]
    %v204 = vld [vmem:[#allocation2 + $0x1] sm:$0x1]
    %vm205 = vcmask 57344
    %v206 = vsel %vm205, %v127, -inf
    %207 = vmax.xlane.f32.xlu0 %v206
    %v208 = vpop.xlane.xlu0 %207
    %v209 = vsel %vm205, %v200, -inf
    %210 = vmax.xlane.f32.xlu0 %v209
    %v211 = vpop.xlane.xlu0 %210
    %v212 = vmax.f32 %v203, %v208
    %v213 = vmax.f32 %v204, %v211
    %v214 = vsub.f32 %v203, %v212
    %v215 = vsub.f32 %v204, %v213
    %v216 = vmul.f32 %v214, 1.442695
    %v217 = vpow.pop %v216
    %v218 = vmul.f32 %v215, 1.442695
    %v219 = vpow.pop %v218
    %221 = vset.pattern.permute.xlu0 0
    %222 = vperm.xlu0 %221, %v212
    %v223 = vpop.permute.xlu0 %222
    %v225 = vlaneseq
    %v226 = vshrl.u32 %v225, 7
    %v227 = vsub.s32 0, %v226
    %v228 = vrot.slane %v223, %v227
    %230 = vset.pattern.permute.xlu0 0
    %231 = vperm.xlu0 %230, %v213
    %v232 = vpop.permute.xlu0 %231
    %v234 = vlaneseq
    %v235 = vshrl.u32 %v234, 7
    %v236 = vsub.s32 0, %v235
    %v237 = vrot.slane %v232, %v236
    %v238 = vsub.f32 %v127, %v228
    %v239 = vsub.f32 %v200, %v237
    %v240 = vmul.f32 %v238, 1.442695
    %v241 = vpow.pop %v240
    %v242 = vmul.f32 %v239, 1.442695
    %v243 = vpow.pop %v242
    %v244 = vld [vmem:[#allocation3] sm:$0x1]
    %v245 = vld [vmem:[#allocation3 + $0x1] sm:$0x1]
    %v246 = vmul.f32 %v217, %v244
    %v247 = vmul.f32 %v219, %v245
    %v248 = vsel %vm205, %v241, 0.0
    %249 = vadd.xlane.f32.xlu0 %v248
    %v250 = vpop.xlane.xlu0 %249
    %v251 = vsel %vm205, %v243, 0.0
    %252 = vadd.xlane.f32.xlu0 %v251
    %v253 = vpop.xlane.xlu0 %252
    %v254 = vadd.f32 %v246, %v250
    %v255 = vadd.f32 %v247, %v253
    %vm256 = vcmask 0
    %257 = vst.msk [vmem:[#allocation3] sm:$0x1] %vm256, %v254
    %258 = vst.msk [vmem:[#allocation3 + $0x1] sm:$0x1] %vm256, %v255
    %v259 = vld [vmem:[#allocation4] sm:$0x1]
    %v260 = vld [vmem:[#allocation4 + $0x1] sm:$0x1]
    %262 = vset.pattern.permute.xlu0 0
    %263 = vperm.xlu0 %262, %v217
    %v264 = vpop.permute.xlu0 %263
    %v266 = vlaneseq
    %v267 = vshrl.u32 %v266, 7
    %v268 = vsub.s32 0, %v267
    %v269 = vrot.slane %v264, %v268
    %271 = vset.pattern.permute.xlu0 0
    %272 = vperm.xlu0 %271, %v219
    %v273 = vpop.permute.xlu0 %272
    %v275 = vlaneseq
    %v276 = vshrl.u32 %v275, 7
    %v277 = vsub.s32 0, %v276
    %v278 = vrot.slane %v273, %v277
    %v279 = vmul.f32 %v269, %v259
    %v280 = vmul.f32 %v278, %v260
    %vm281 = vcmask 64512
    %v283 = vsel %vm281, %v241, 0
    %285 = vmatprep.subr.mxu0 0.0
    %286 = vmatpush1.msra.mxu0 %v50
    %287 = vmatprep.subr.mxu0 0.0
    %288 = vmatpush1.msra.mxu0 0.0
    %289 = vmatprep.subr.mxu0 0.0
    %290 = vmatpush1.msra.mxu0 0.0
    %291 = vmatprep.subr.mxu0 0.0
    %292 = vmatpush1.msra.mxu0 0.0
    %293 = vmatprep.subr.mxu0 0.0
    %294 = vmatpush1.msra.mxu0 0.0
    %295 = vmatprep.subr.mxu0 0.0
    %296 = vmatpush1.msra.mxu0 0.0
    %297 = vmatprep.subr.mxu0 0.0
    %298 = vmatpush1.msra.mxu0 0.0
    %299 = vmatprep.subr.mxu0 0.0
    %300 = vmatpush1.msra.mxu0 0.0
    %301 = vmatprep.subr.mxu0 0.0
    %302 = vmatpush1.msra.mxu0 0.0
    %303 = vmatprep.subr.mxu0 0.0
    %304 = vmatpush1.msra.mxu0 0.0
    %305 = vmatprep.subr.mxu0 0.0
    %306 = vmatpush1.msra.mxu0 0.0
    %307 = vmatprep.subr.mxu0 0.0
    %308 = vmatpush1.msra.mxu0 0.0
    %309 = vmatprep.subr.mxu0 0.0
    %310 = vmatpush1.msra.mxu0 0.0
    %311 = vmatprep.subr.mxu0 0.0
    %312 = vmatpush1.msra.mxu0 0.0
    %313 = vmatprep.subr.mxu0 0.0
    %314 = vmatpush1.msra.mxu0 0.0
    %315 = vmatprep.subr.mxu0 0.0
    %316 = vmatpush1.msra.mxu0 0.0
    %317 = vmatprep.subr.mxu0 0.0
    %318 = vmatpush1.msra.mxu0 0.0
    %319 = vmatprep.subr.mxu0 0.0
    %320 = vmatpush1.msra.mxu0 0.0
    %321 = vmatprep.subr.mxu0 0.0
    %322 = vmatpush1.msra.mxu0 0.0
    %323 = vmatprep.subr.mxu0 0.0
    %324 = vmatpush1.msra.mxu0 0.0
    %325 = vmatprep.subr.mxu0 0.0
    %326 = vmatpush1.msra.mxu0 0.0
    %327 = vmatprep.subr.mxu0 0.0
    %328 = vmatpush1.msra.mxu0 0.0
    %329 = vmatprep.subr.mxu0 0.0
    %330 = vmatpush1.msra.mxu0 0.0
    %331 = vmatprep.subr.mxu0 0.0
    %332 = vmatpush1.msra.mxu0 0.0
    %333 = vmatprep.subr.mxu0 0.0
    %334 = vmatpush1.msra.mxu0 0.0
    %335 = vmatprep.subr.mxu0 0.0
    %336 = vmatpush1.msra.mxu0 0.0
    %337 = vmatprep.subr.mxu0 0.0
    %338 = vmatpush1.msra.mxu0 0.0
    %339 = vmatprep.subr.mxu0 0.0
    %340 = vmatpush1.msra.mxu0 0.0
    %341 = vmatprep.subr.mxu0 0.0
    %342 = vmatpush1.msra.mxu0 0.0
    %343 = vmatprep.subr.mxu0 0.0
    %344 = vmatpush1.msra.mxu0 0.0
    %345 = vmatprep.subr.mxu0 0.0
    %346 = vmatpush1.msra.mxu0 0.0
    %347 = vmatprep.subr.mxu0 0.0
    %348 = vmatpush1.msra.mxu0 0.0
    %349 = vmatprep.mubr.f32.mxu0 0.0
    %350 = vmatmul.mubr.f32.gmra.mrb[0].mxu0 %v283
    %v351 = vpop.f32.mrb[0].mxu0
    %v352 = vadd.f32 0.0, %v351
    %v353 = vpop.f32.mrb[0].mxu0
    %354 = vdwg.mxu0
    %v356 = vsel %vm281, %v243, 0
    %358 = vmatprep.subr.mxu0 0.0
    %359 = vmatpush1.msra.mxu0 %v51
    %360 = vmatprep.subr.mxu0 0.0
    %361 = vmatpush1.msra.mxu0 0.0
    %362 = vmatprep.subr.mxu0 0.0
    %363 = vmatpush1.msra.mxu0 0.0
    %364 = vmatprep.subr.mxu0 0.0
    %365 = vmatpush1.msra.mxu0 0.0
    %366 = vmatprep.subr.mxu0 0.0
    %367 = vmatpush1.msra.mxu0 0.0
    %368 = vmatprep.subr.mxu0 0.0
    %369 = vmatpush1.msra.mxu0 0.0
    %370 = vmatprep.subr.mxu0 0.0
    %371 = vmatpush1.msra.mxu0 0.0
    %372 = vmatprep.subr.mxu0 0.0
    %373 = vmatpush1.msra.mxu0 0.0
    %374 = vmatprep.subr.mxu0 0.0
    %375 = vmatpush1.msra.mxu0 0.0
    %376 = vmatprep.subr.mxu0 0.0
    %377 = vmatpush1.msra.mxu0 0.0
    %378 = vmatprep.subr.mxu0 0.0
    %379 = vmatpush1.msra.mxu0 0.0
    %380 = vmatprep.subr.mxu0 0.0
    %381 = vmatpush1.msra.mxu0 0.0
    %382 = vmatprep.subr.mxu0 0.0
    %383 = vmatpush1.msra.mxu0 0.0
    %384 = vmatprep.subr.mxu0 0.0
    %385 = vmatpush1.msra.mxu0 0.0
    %386 = vmatprep.subr.mxu0 0.0
    %387 = vmatpush1.msra.mxu0 0.0
    %388 = vmatprep.subr.mxu0 0.0
    %389 = vmatpush1.msra.mxu0 0.0
    %390 = vmatprep.subr.mxu0 0.0
    %391 = vmatpush1.msra.mxu0 0.0
    %392 = vmatprep.subr.mxu0 0.0
    %393 = vmatpush1.msra.mxu0 0.0
    %394 = vmatprep.subr.mxu0 0.0
    %395 = vmatpush1.msra.mxu0 0.0
    %396 = vmatprep.subr.mxu0 0.0
    %397 = vmatpush1.msra.mxu0 0.0
    %398 = vmatprep.subr.mxu0 0.0
    %399 = vmatpush1.msra.mxu0 0.0
    %400 = vmatprep.subr.mxu0 0.0
    %401 = vmatpush1.msra.mxu0 0.0
    %402 = vmatprep.subr.mxu0 0.0
    %403 = vmatpush1.msra.mxu0 0.0
    %404 = vmatprep.subr.mxu0 0.0
    %405 = vmatpush1.msra.mxu0 0.0
    %406 = vmatprep.subr.mxu0 0.0
    %407 = vmatpush1.msra.mxu0 0.0
    %408 = vmatprep.subr.mxu0 0.0
    %409 = vmatpush1.msra.mxu0 0.0
    %410 = vmatprep.subr.mxu0 0.0
    %411 = vmatpush1.msra.mxu0 0.0
    %412 = vmatprep.subr.mxu0 0.0
    %413 = vmatpush1.msra.mxu0 0.0
    %414 = vmatprep.subr.mxu0 0.0
    %415 = vmatpush1.msra.mxu0 0.0
    %416 = vmatprep.subr.mxu0 0.0
    %417 = vmatpush1.msra.mxu0 0.0
    %418 = vmatprep.subr.mxu0 0.0
    %419 = vmatpush1.msra.mxu0 0.0
    %420 = vmatprep.subr.mxu0 0.0
    %421 = vmatpush1.msra.mxu0 0.0
    %422 = vmatprep.mubr.f32.mxu0 0.0
    %423 = vmatmul.mubr.f32.gmra.mrb[0].mxu0 %v356
    %v424 = vpop.f32.mrb[0].mxu0
    %v425 = vadd.f32 0.0, %v424
    %v426 = vpop.f32.mrb[0].mxu0
    %427 = vdwg.mxu0
    %v428 = vadd.f32 %v279, %v352
    %v429 = vadd.f32 %v280, %v425
    %vm430 = vcmask 253952
    %431 = vst.msk [vmem:[#allocation4] sm:$0x1] %vm430, %v428
    %432 = vst.msk [vmem:[#allocation4 + $0x1] sm:$0x1] %vm430, %v429
    %433 = vst.msk [vmem:[#allocation2] sm:$0x1] %vm256, %v212
    %434 = vst.msk [vmem:[#allocation2 + $0x1] sm:$0x1] %vm256, %v213
    // Predicated region
    $region22: #{tpu_custom_call.1} parent=1 // pred_check
      %p435 = pneg %p38
    $region23: #{tpu_custom_call.1} parent=1 // pred_check_branch
      %437 = sbr.rel (%p435) target = $region25
    $region24: #{tpu_custom_call.1} parent=1 // pred_region
      %v438 = vld [vmem:[#allocation4] sm:$0x1]
      %v439 = vld [vmem:[#allocation4 + $0x1] sm:$0x1]
      %v440 = vld [vmem:[#allocation3] sm:$0x1]
      %v441 = vld [vmem:[#allocation3 + $0x1] sm:$0x1]
      %443 = vset.pattern.permute.xlu0 0
      %444 = vperm.xlu0 %443, %v440
      %v445 = vpop.permute.xlu0 %444
      %v447 = vlaneseq
      %v448 = vshrl.u32 %v447, 7
      %v449 = vsub.s32 0, %v448
      %v450 = vrot.slane %v445, %v449
      %452 = vset.pattern.permute.xlu0 0
      %453 = vperm.xlu0 %452, %v441
      %v454 = vpop.permute.xlu0 %453
      %v456 = vlaneseq
      %v457 = vshrl.u32 %v456, 7
      %v458 = vsub.s32 0, %v457
      %v459 = vrot.slane %v454, %v458
      %v460 = vrcp.pop %v450
      %v461 = vmul.f32 %v438, %v460
      %v462 = vrcp.pop %v459
      %v463 = vmul.f32 %v439, %v462
      %v466 = vcombine.low %v461, %v463
      %v468 = vunpack.c.l.s4 1966171168
      %v469 = vunpack.c.0.s8 %v468
      %v470 = vlaneseq
      %v471 = vshrl.u32 %v470, 7
      %v472 = vsub.s32 %v469, %v471
      %v473 = vrot.slane %v466, %v472
      %v475 = vunpack.c.l.s4 1966171168
      %v476 = vunpack.c.0.s8 %v475
      %v477 = vlaneseq
      %v478 = vshrl.u32 %v477, 7
      %v479 = vsub.s32 %v476, %v478
      %v480 = vrot.slane %v473, %v479
      %vm482 = vcmask 254976
      %483 = vst.msk [vmem:[#allocation10] sm:$0x3] %vm482, %v480
    $region25: #{tpu_custom_call.1} parent=1 // pred_fallthru
      _
    // Predicated region
    $region26: #{tpu_custom_call.1} parent=1 // pred_check
      _
    $region27: #{tpu_custom_call.1} parent=1 // pred_check_branch
      %485 = sbr.rel (0) target = $region29
    $region28: #{tpu_custom_call.1} parent=1 // pred_region
      %s487 = ssub.s32 32, 32
      %488 = vsyncadd [#allocation7], %s487
      %s490 = sshll.u32 [#allocation10], 4
      %s491 = int_to_ptr.vmem [resolvable:$true] %s490
      %493 = dma.vmem_to_hbm [thread:$0]  %s491, 32, %s2, [#allocation7]
    $region29: #{tpu_custom_call.1} parent=1 // pred_fallthru
      _
    // Predicated region
    $region30: #{tpu_custom_call.1} parent=1 // pred_check
      _
    $region31: #{tpu_custom_call.1} parent=1 // pred_check_branch
      %495 = sbr.rel (0) target = $region33
    $region32: #{tpu_custom_call.1} parent=1 // pred_region
      %496 = dma.done [#allocation7], 32
    $region33: #{tpu_custom_call.1} parent=1 // pred_fallthru
      _
    %497 = vsyncpa [#allocation6], 1
    %498 = vsyncpa [#allocation9], 1
    %499 = vsyncpa [#allocation7], 1

</llo_original>
